<compile_context>
chip_gen: v6e
topology: v6e:2x2x1
jax: 0.10.0
libtpu: 0.0.40
codegen_flags: <defaults>
</compile_context>

<pallas_src>
import functools

import jax
import jax.numpy as jnp
from jax.experimental import pallas as pl
from jax.experimental.pallas import tpu as pltpu


def _round_up(x, m):
    return (x + m - 1) // m * m


def _pad_to(a, shape):
    pads = [(0, s - d) for d, s in zip(a.shape, shape)]
    if all(p == (0, 0) for p in pads):
        return a
    return jnp.pad(a, pads)


# -----------------------------------------------------------------------------
# Fused kernel: per-chunk input projection (MXU) + sequential recurrence +
# decode of the final hidden state on the last grid step.
# -----------------------------------------------------------------------------
def rnn_fused_kernel(x_ref, wxT_ref, bh_ref, whT_ref, h0_ref, wdT_ref, bd_ref,
                     out_ref, dec_ref, h_scratch, xp_scratch,
                     *, seq_len, t_chunk, guard_tail):
    c = pl.program_id(0)
    b_pad = x_ref.shape[1]
    i_pad = x_ref.shape[2]
    h_pad = whT_ref.shape[0]

    @pl.when(c == 0)
    def _():
        h_scratch[...] = h0_ref[...]

    # ---- Input projection for this whole chunk: one big MXU-friendly matmul.
    x2d = x_ref[...].reshape(t_chunk * b_pad, i_pad)
    xp = (
        jnp.dot(x2d, wxT_ref[...], preferred_element_type=jnp.float32)
        + bh_ref[...]
    )
    xp_scratch[...] = xp.reshape(t_chunk, b_pad, h_pad)

    # ---- Sequential recurrence over the chunk (hidden state carried in f32).
    whT = whT_ref[...]                        # (H_pad, H_pad), resident
    w_dtype = whT.dtype

    def step(s, h):
        pre = (
            jnp.dot(h.astype(w_dtype), whT, preferred_element_type=jnp.float32)
            + xp_scratch[s]
        )
        h_new = jnp.tanh(pre)
        if guard_tail:
            # Only emitted when L % t_chunk != 0: padded tail timesteps carry
            # h through unchanged so the fused decode sees the true final h.
            t = c * t_chunk + s
            h_new = jnp.where(t < seq_len, h_new, h)
        out_ref[s] = h_new.astype(out_ref.dtype)
        return h_new

    h = jax.lax.fori_loop(0, t_chunk, step, h_scratch[...], unroll=True)
    h_scratch[...] = h

    @pl.when(c == pl.num_programs(0) - 1)
    def _():
        dec_ref[...] = (
            jnp.dot(h.astype(wdT_ref.dtype), wdT_ref[...],
                    preferred_element_type=jnp.float32)
            + bd_ref[...]
        ).astype(dec_ref.dtype)


def rnn_forward(x, h0, W_x, W_h, b_h, W_d, b_d, *,
                t_chunk=32, compute_dtype=jnp.float32):
    """x: (B, L, I), h0: (B, H).

    Returns:
      out: (L, B, H)  -- hidden state at every timestep (PyTorch forward output)
      dec: (B, O)     -- decode(final hidden) == linear(out[-1], W_d, b_d)
    """
    B, L, I = x.shape
    H = h0.shape[1]
    O = W_d.shape[0]
    cdt = jnp.dtype(compute_dtype)
    out_dtype = jnp.dtype(x.dtype)

    # TPU-friendly padding: lanes (last dim) to 128, sublanes to 8 (16 for bf16).
    min_sublane = 16 if (cdt == jnp.bfloat16 or out_dtype == jnp.bfloat16) else 8
    B_pad = _round_up(B, min_sublane)
    I_pad = _round_up(I, 128)
    H_pad = _round_up(H, 128)
    O_pad = _round_up(O, 128)

    # Chunk size: amortize ~0.35us/grid-step overhead; prefer a divisor of L so
    # the per-step tail guard compiles away.
    t_chunk = max(1, min(t_chunk, L))
    if L % t_chunk != 0:
        for cand in range(t_chunk, 0, -1):
            if L % cand == 0 and cand >= max(1, t_chunk // 2):
                t_chunk = cand
                break
    guard_tail = (L % t_chunk != 0)
    L_pad = _round_up(L, t_chunk)
    n_chunks = L_pad // t_chunk

    # Time-major, zero-padded input. Zero padding + zero-padded weights means
    # padded lanes contribute nothing and padded hidden lanes stay exactly 0.
    x_p = _pad_to(jnp.transpose(x, (1, 0, 2)), (L_pad, B_pad, I_pad)).astype(cdt)

    wxT = _pad_to(W_x.T, (I_pad, H_pad)).astype(cdt)      # pre-transposed weights
    whT = _pad_to(W_h.T, (H_pad, H_pad)).astype(cdt)
    wdT = _pad_to(W_d.T, (H_pad, O_pad)).astype(cdt)
    bh = _pad_to(b_h.reshape(1, H), (1, H_pad)).astype(jnp.float32)
    bd = _pad_to(b_d.reshape(1, O), (1, O_pad)).astype(jnp.float32)
    h0_p = _pad_to(h0, (B_pad, H_pad)).astype(jnp.float32)

    # Explicit VMEM budget from actual block sizes (double-buffered I/O blocks,
    # resident weights, scratches) so larger t_chunk / H compile on all chips.
    c_bytes = cdt.itemsize
    o_bytes = out_dtype.itemsize
    vmem_need = (
        2 * t_chunk * B_pad * I_pad * c_bytes            # x chunk (dbl buf)
        + 2 * t_chunk * B_pad * H_pad * o_bytes          # out chunk (dbl buf)
        + 2 * (I_pad * H_pad + H_pad * H_pad + H_pad * O_pad) * c_bytes  # weights
        + 2 * (B_pad * H_pad + H_pad + O_pad) * 4        # h0, b_h, b_d
        + 2 * B_pad * O_pad * o_bytes                    # dec
        + B_pad * H_pad * 4 + t_chunk * B_pad * H_pad * 4  # scratches
    )
    vmem_limit = int(min(max(2 * vmem_need, 16 << 20), 64 << 20))

    kernel = functools.partial(rnn_fused_kernel, seq_len=L, t_chunk=t_chunk,
                               guard_tail=guard_tail)
    out_p, dec_p = pl.pallas_call(
        kernel,
        out_shape=(
            jax.ShapeDtypeStruct((L_pad, B_pad, H_pad), out_dtype),
            jax.ShapeDtypeStruct((B_pad, O_pad), out_dtype),
        ),
        grid=(n_chunks,),
        in_specs=[
            pl.BlockSpec((t_chunk, B_pad, I_pad), lambda c: (c, 0, 0)),  # x chunk
            pl.BlockSpec((I_pad, H_pad), lambda c: (0, 0)),              # W_x.T
            pl.BlockSpec((1, H_pad), lambda c: (0, 0)),                  # b_h
            pl.BlockSpec((H_pad, H_pad), lambda c: (0, 0)),              # W_h.T
            pl.BlockSpec((B_pad, H_pad), lambda c: (0, 0)),              # h0
            pl.BlockSpec((H_pad, O_pad), lambda c: (0, 0)),              # W_d.T
            pl.BlockSpec((1, O_pad), lambda c: (0, 0)),                  # b_d
        ],
        out_specs=(
            pl.BlockSpec((t_chunk, B_pad, H_pad), lambda c: (c, 0, 0)),
            pl.BlockSpec((B_pad, O_pad), lambda c: (0, 0)),              # resident
        ),
        scratch_shapes=[
            pltpu.VMEM((B_pad, H_pad), jnp.float32),           # hidden carry
            pltpu.VMEM((t_chunk, B_pad, H_pad), jnp.float32),  # chunk x-projection
        ],
        compiler_params=pltpu.CompilerParams(
            dimension_semantics=("arbitrary",),      # recurrence is sequential
            vmem_limit_bytes=vmem_limit,
        ),
        # TODO(synk): single-buffer the grid-invariant weight specs
        # (pipeline_mode=pl.Buffered(1)) and K-tile W_h.T for very large H on
        # v7x (64 MiB VMEM); on v7x also shard a leading batch-tile grid axis
        # across the two TensorCores.
    )(x_p, wxT, bh, whT, h0_p, wdT, bd)

    return out_p[:L, :B, :H], dec_p[:B, :O]


# -----------------------------------------------------------------------------
# Standalone decode (module's .decode) — pre-transposed W_d.
# -----------------------------------------------------------------------------
def decode_kernel(h_ref, wdT_ref, bd_ref, o_ref):
    o_ref[...] = (
        jnp.dot(h_ref[...], wdT_ref[...], preferred_element_type=jnp.float32)
        + bd_ref[...]
    ).astype(o_ref.dtype)


def rnn_decode(h, W_d, b_d, *, compute_dtype=jnp.float32):
    B, H = h.shape
    O = W_d.shape[0]
    B_pad = _round_up(B, 8)
    H_pad = _round_up(H, 128)
    O_pad = _round_up(O, 128)
    h_p = _pad_to(h, (B_pad, H_pad)).astype(compute_dtype)
    wdT = _pad_to(W_d.T, (H_pad, O_pad)).astype(compute_dtype)
    bd = _pad_to(b_d.reshape(1, O), (1, O_pad)).astype(jnp.float32)
    out = pl.pallas_call(
        decode_kernel,
        out_shape=jax.ShapeDtypeStruct((B_pad, O_pad), h.dtype),
        grid=(1,),
        in_specs=[
            pl.BlockSpec((B_pad, H_pad), lambda i: (0, 0)),
            pl.BlockSpec((H_pad, O_pad), lambda i: (0, 0)),
            pl.BlockSpec((1, O_pad), lambda i: (0, 0)),
        ],
        out_specs=pl.BlockSpec((B_pad, O_pad), lambda i: (0, 0)),
    )(h_p, wdT, bd)
    return out[:B, :O]


# -----------------------------------------------------------------------------
# Pure-JAX reference of the PyTorch loop.
# -----------------------------------------------------------------------------
def rnn_forward_ref(x, h0, W_x, W_h, b_h):
    def step(h, x_t):
        h_new = jnp.tanh(x_t @ W_x.T + h @ W_h.T + b_h)
        return h_new, h_new
    _, ys = jax.lax.scan(step, h0, jnp.transpose(x, (1, 0, 2)))
    return ys  # (L, B, H)


if __name__ == "__main__":
    B, L, I, H, O = 2, 8, 16, 32, 10

    key = jax.random.PRNGKey(0)
    k_x, k_wx, k_wh, k_wd, k_bh, k_bd = jax.random.split(key, 6)

    W_x = jax.random.normal(k_wx, (H, I), dtype=jnp.float32)
    W_h = jax.random.normal(k_wh, (H, H), dtype=jnp.float32)
    W_d = jax.random.normal(k_wd, (O, H), dtype=jnp.float32)
    b_h = jax.random.normal(k_bh, (H,), dtype=jnp.float32)
    b_d = jax.random.normal(k_bd, (O,), dtype=jnp.float32)

    x = jax.random.normal(k_x, (B, L, I), dtype=jnp.float32)
    h0 = jnp.zeros((B, H), dtype=jnp.float32)   # module's self.h0 broadcast to batch

    # f32 path: correctness check against the reference loop (tolerances allow
    # for MXU accumulation-order differences).
    out, dec = jax.block_until_ready(rnn_forward(x, h0, W_x, W_h, b_h, W_d, b_d))
    assert out.shape == (L, B, H), out.shape
    assert dec.shape == (B, O), dec.shape

    ref = rnn_forward_ref(x, h0, W_x, W_h, b_h)
    assert jnp.allclose(out, ref, atol=1e-3, rtol=1e-3), float(jnp.abs(out - ref).max())
    ref_dec = ref[-1] @ W_d.T + b_d
    assert jnp.allclose(dec, ref_dec, atol=1e-2, rtol=1e-3), float(jnp.abs(dec - ref_dec).max())

    dec2 = jax.block_until_ready(rnn_decode(out[-1], W_d, b_d))
    assert jnp.allclose(dec2, ref_dec, atol=1e-2, rtol=1e-3), float(jnp.abs(dec2 - ref_dec).max())

    # bf16 weights/activations (f32 accumulation + f32 hidden carry): smoke check.
    out_bf, dec_bf = jax.block_until_ready(
        rnn_forward(x, h0, W_x, W_h, b_h, W_d, b_d, compute_dtype=jnp.bfloat16))
    assert out_bf.shape == (L, B, H) and dec_bf.shape == (B, O)
    assert bool(jnp.all(jnp.isfinite(out_bf))) and bool(jnp.all(jnp.isfinite(dec_bf)))

    print("KERNEL_OK")
</pallas_src>

<mosaic_0001>
module attributes {stable_mosaic.version = 11 : i64} {
  func.func @rnn_fused_kernel(%arg0: i32, %arg1: memref<8x8x128xf32, #tpu.memory_space<vmem>>, %arg2: memref<128x128xf32, #tpu.memory_space<vmem>>, %arg3: memref<1x128xf32, #tpu.memory_space<vmem>>, %arg4: memref<128x128xf32, #tpu.memory_space<vmem>>, %arg5: memref<8x128xf32, #tpu.memory_space<vmem>>, %arg6: memref<128x128xf32, #tpu.memory_space<vmem>>, %arg7: memref<1x128xf32, #tpu.memory_space<vmem>>, %arg8: memref<8x8x128xf32, #tpu.memory_space<vmem>>, %arg9: memref<8x128xf32, #tpu.memory_space<vmem>>, %arg10: memref<8x128xf32, #tpu.memory_space<vmem>>, %arg11: memref<8x8x128xf32, #tpu.memory_space<vmem>>) attributes {dimension_semantics = [#tpu.dimension_semantics<arbitrary>], iteration_bounds = array<i64: 1>, scalar_prefetch = 0 : i64, scratch_operands = 2 : i64, tpu.core_type = #tpu.core_type<tc>, window_params = [{transform_indices = @transform_0, window_bounds = array<i64: 8, 8, 128>}, {pipeline_mode = #tpu.pipeline_mode<synchronous>, transform_indices = @transform_1, window_bounds = array<i64: 128, 128>}, {pipeline_mode = #tpu.pipeline_mode<synchronous>, transform_indices = @transform_2, window_bounds = array<i64: 1, 128>}, {pipeline_mode = #tpu.pipeline_mode<synchronous>, transform_indices = @transform_3, window_bounds = array<i64: 128, 128>}, {pipeline_mode = #tpu.pipeline_mode<synchronous>, transform_indices = @transform_4, window_bounds = array<i64: 8, 128>}, {pipeline_mode = #tpu.pipeline_mode<synchronous>, transform_indices = @transform_5, window_bounds = array<i64: 128, 128>}, {pipeline_mode = #tpu.pipeline_mode<synchronous>, transform_indices = @transform_6, window_bounds = array<i64: 1, 128>}, {transform_indices = @transform_7, window_bounds = array<i64: 8, 8, 128>}, {pipeline_mode = #tpu.pipeline_mode<synchronous>, transform_indices = @transform_8, window_bounds = array<i64: 8, 128>}]} {
    %c0_i32 = arith.constant 0 : i32
    %0 = arith.cmpi eq, %arg0, %c0_i32 : i32
    %1 = arith.extui %0 : i1 to i32
    %c0_i32_0 = arith.constant 0 : i32
    %2 = arith.cmpi ne, %1, %c0_i32_0 : i32
    scf.if %2 {
      %c0_59 = arith.constant 0 : index
      %c0_60 = arith.constant 0 : index
      %98 = vector.load %arg5[%c0_59, %c0_60] : memref<8x128xf32, #tpu.memory_space<vmem>>, vector<8x128xf32>
      %c0_61 = arith.constant 0 : index
      %c0_62 = arith.constant 0 : index
      %99 = vector.load %arg10[%c0_61, %c0_62] : memref<8x128xf32, #tpu.memory_space<vmem>>, vector<8x128xf32>
      tpu.vector_store %arg10[%c0_61, %c0_62], %98 {strides = array<i32>} : memref<8x128xf32, #tpu.memory_space<vmem>>, vector<8x128xf32>,
    } else {
    }
    %c0 = arith.constant 0 : index
    %c0_1 = arith.constant 0 : index
    %c0_2 = arith.constant 0 : index
    %3 = vector.load %arg1[%c0, %c0_1, %c0_2] : memref<8x8x128xf32, #tpu.memory_space<vmem>>, vector<8x8x128xf32>
    %4 = vector.shape_cast %3 : vector<8x8x128xf32> to vector<64x128xf32>
    %c0_3 = arith.constant 0 : index
    %c0_4 = arith.constant 0 : index
    %5 = vector.load %arg2[%c0_3, %c0_4] : memref<128x128xf32, #tpu.memory_space<vmem>>, vector<128x128xf32>
    %cst = arith.constant dense<0.000000e+00> : vector<64x128xf32>
    %6 = tpu.matmul %4, %5, %cst {dimension_numbers = #tpu.dot_dimension_numbers<[1], [0], [0], [1], [0, 0, 1, 1], [], []>} : vector<64x128xf32>, vector<128x128xf32>, vector<64x128xf32> -> vector<64x128xf32>
    %c0_5 = arith.constant 0 : index
    %c0_6 = arith.constant 0 : index
    %7 = vector.load %arg3[%c0_5, %c0_6] : memref<1x128xf32, #tpu.memory_space<vmem>>, vector<1x128xf32>
    %8 = vector.broadcast %7 : vector<1x128xf32> to vector<64x128xf32>
    %9 = arith.addf %6, %8 : vector<64x128xf32>
    %10 = vector.shape_cast %9 : vector<64x128xf32> to vector<8x8x128xf32>
    %c0_7 = arith.constant 0 : index
    %c0_8 = arith.constant 0 : index
    %c0_9 = arith.constant 0 : index
    %11 = vector.load %arg11[%c0_7, %c0_8, %c0_9] : memref<8x8x128xf32, #tpu.memory_space<vmem>>, vector<8x8x128xf32>
    tpu.vector_store %arg11[%c0_7, %c0_8, %c0_9], %10 {strides = array<i32>} : memref<8x8x128xf32, #tpu.memory_space<vmem>>, vector<8x8x128xf32>,
    %c0_10 = arith.constant 0 : index
    %c0_11 = arith.constant 0 : index
    %12 = vector.load %arg4[%c0_10, %c0_11] : memref<128x128xf32, #tpu.memory_space<vmem>>, vector<128x128xf32>
    %c0_12 = arith.constant 0 : index
    %c0_13 = arith.constant 0 : index
    %13 = vector.load %arg10[%c0_12, %c0_13] : memref<8x128xf32, #tpu.memory_space<vmem>>, vector<8x128xf32>
    %c0_i32_14 = arith.constant 0 : i32
    %cst_15 = arith.constant dense<0.000000e+00> : vector<8x128xf32>
    %14 = tpu.matmul %13, %12, %cst_15 {dimension_numbers = #tpu.dot_dimension_numbers<[1], [0], [0], [1], [0, 0, 1, 1], [], []>} : vector<8x128xf32>, vector<128x128xf32>, vector<8x128xf32> -> vector<8x128xf32>
    %15 = arith.index_cast %c0_i32_14 : i32 to index
    %c0_16 = arith.constant 0 : index
    %c0_17 = arith.constant 0 : index
    %16 = vector.load %arg11[%15, %c0_16, %c0_17] : memref<8x8x128xf32, #tpu.memory_space<vmem>>, vector<1x8x128xf32>
    %17 = vector.shape_cast %16 : vector<1x8x128xf32> to vector<8x128xf32>
    %18 = arith.addf %14, %17 : vector<8x128xf32>
    %19 = math.tanh %18 : vector<8x128xf32>
    %20 = arith.index_cast %c0_i32_14 : i32 to index
    %c0_18 = arith.constant 0 : index
    %c0_19 = arith.constant 0 : index
    %21 = vector.load %arg8[%20, %c0_18, %c0_19] : memref<8x8x128xf32, #tpu.memory_space<vmem>>, vector<1x8x128xf32>
    %22 = vector.shape_cast %21 : vector<1x8x128xf32> to vector<8x128xf32>
    %23 = vector.shape_cast %19 : vector<8x128xf32> to vector<1x8x128xf32>
    tpu.vector_store %arg8[%20, %c0_18, %c0_19], %23 {strides = array<i32>} : memref<8x8x128xf32, #tpu.memory_space<vmem>>, vector<1x8x128xf32>,
    %c1_i32 = arith.constant 1 : i32
    %cst_20 = arith.constant dense<0.000000e+00> : vector<8x128xf32>
    %24 = tpu.matmul %19, %12, %cst_20 {dimension_numbers = #tpu.dot_dimension_numbers<[1], [0], [0], [1], [0, 0, 1, 1], [], []>} : vector<8x128xf32>, vector<128x128xf32>, vector<8x128xf32> -> vector<8x128xf32>
    %25 = arith.index_cast %c1_i32 : i32 to index
    %c0_21 = arith.constant 0 : index
    %c0_22 = arith.constant 0 : index
    %26 = vector.load %arg11[%25, %c0_21, %c0_22] : memref<8x8x128xf32, #tpu.memory_space<vmem>>, vector<1x8x128xf32>
    %27 = vector.shape_cast %26 : vector<1x8x128xf32> to vector<8x128xf32>
    %28 = arith.addf %24, %27 : vector<8x128xf32>
    %29 = math.tanh %28 : vector<8x128xf32>
    %30 = arith.index_cast %c1_i32 : i32 to index
    %c0_23 = arith.constant 0 : index
    %c0_24 = arith.constant 0 : index
    %31 = vector.load %arg8[%30, %c0_23, %c0_24] : memref<8x8x128xf32, #tpu.memory_space<vmem>>, vector<1x8x128xf32>
    %32 = vector.shape_cast %31 : vector<1x8x128xf32> to vector<8x128xf32>
    %33 = vector.shape_cast %29 : vector<8x128xf32> to vector<1x8x128xf32>
    tpu.vector_store %arg8[%30, %c0_23, %c0_24], %33 {strides = array<i32>} : memref<8x8x128xf32, #tpu.memory_space<vmem>>, vector<1x8x128xf32>,
    %c2_i32 = arith.constant 2 : i32
    %cst_25 = arith.constant dense<0.000000e+00> : vector<8x128xf32>
    %34 = tpu.matmul %29, %12, %cst_25 {dimension_numbers = #tpu.dot_dimension_numbers<[1], [0], [0], [1], [0, 0, 1, 1], [], []>} : vector<8x128xf32>, vector<128x128xf32>, vector<8x128xf32> -> vector<8x128xf32>
    %35 = arith.index_cast %c2_i32 : i32 to index
    %c0_26 = arith.constant 0 : index
    %c0_27 = arith.constant 0 : index
    %36 = vector.load %arg11[%35, %c0_26, %c0_27] : memref<8x8x128xf32, #tpu.memory_space<vmem>>, vector<1x8x128xf32>
    %37 = vector.shape_cast %36 : vector<1x8x128xf32> to vector<8x128xf32>
    %38 = arith.addf %34, %37 : vector<8x128xf32>
    %39 = math.tanh %38 : vector<8x128xf32>
    %40 = arith.index_cast %c2_i32 : i32 to index
    %c0_28 = arith.constant 0 : index
    %c0_29 = arith.constant 0 : index
    %41 = vector.load %arg8[%40, %c0_28, %c0_29] : memref<8x8x128xf32, #tpu.memory_space<vmem>>, vector<1x8x128xf32>
    %42 = vector.shape_cast %41 : vector<1x8x128xf32> to vector<8x128xf32>
    %43 = vector.shape_cast %39 : vector<8x128xf32> to vector<1x8x128xf32>
    tpu.vector_store %arg8[%40, %c0_28, %c0_29], %43 {strides = array<i32>} : memref<8x8x128xf32, #tpu.memory_space<vmem>>, vector<1x8x128xf32>,
    %c3_i32 = arith.constant 3 : i32
    %cst_30 = arith.constant dense<0.000000e+00> : vector<8x128xf32>
    %44 = tpu.matmul %39, %12, %cst_30 {dimension_numbers = #tpu.dot_dimension_numbers<[1], [0], [0], [1], [0, 0, 1, 1], [], []>} : vector<8x128xf32>, vector<128x128xf32>, vector<8x128xf32> -> vector<8x128xf32>
    %45 = arith.index_cast %c3_i32 : i32 to index
    %c0_31 = arith.constant 0 : index
    %c0_32 = arith.constant 0 : index
    %46 = vector.load %arg11[%45, %c0_31, %c0_32] : memref<8x8x128xf32, #tpu.memory_space<vmem>>, vector<1x8x128xf32>
    %47 = vector.shape_cast %46 : vector<1x8x128xf32> to vector<8x128xf32>
    %48 = arith.addf %44, %47 : vector<8x128xf32>
    %49 = math.tanh %48 : vector<8x128xf32>
    %50 = arith.index_cast %c3_i32 : i32 to index
    %c0_33 = arith.constant 0 : index
    %c0_34 = arith.constant 0 : index
    %51 = vector.load %arg8[%50, %c0_33, %c0_34] : memref<8x8x128xf32, #tpu.memory_space<vmem>>, vector<1x8x128xf32>
    %52 = vector.shape_cast %51 : vector<1x8x128xf32> to vector<8x128xf32>
    %53 = vector.shape_cast %49 : vector<8x128xf32> to vector<1x8x128xf32>
    tpu.vector_store %arg8[%50, %c0_33, %c0_34], %53 {strides = array<i32>} : memref<8x8x128xf32, #tpu.memory_space<vmem>>, vector<1x8x128xf32>,
    %c4_i32 = arith.constant 4 : i32
    %cst_35 = arith.constant dense<0.000000e+00> : vector<8x128xf32>
    %54 = tpu.matmul %49, %12, %cst_35 {dimension_numbers = #tpu.dot_dimension_numbers<[1], [0], [0], [1], [0, 0, 1, 1], [], []>} : vector<8x128xf32>, vector<128x128xf32>, vector<8x128xf32> -> vector<8x128xf32>
    %55 = arith.index_cast %c4_i32 : i32 to index
    %c0_36 = arith.constant 0 : index
    %c0_37 = arith.constant 0 : index
    %56 = vector.load %arg11[%55, %c0_36, %c0_37] : memref<8x8x128xf32, #tpu.memory_space<vmem>>, vector<1x8x128xf32>
    %57 = vector.shape_cast %56 : vector<1x8x128xf32> to vector<8x128xf32>
    %58 = arith.addf %54, %57 : vector<8x128xf32>
    %59 = math.tanh %58 : vector<8x128xf32>
    %60 = arith.index_cast %c4_i32 : i32 to index
    %c0_38 = arith.constant 0 : index
    %c0_39 = arith.constant 0 : index
    %61 = vector.load %arg8[%60, %c0_38, %c0_39] : memref<8x8x128xf32, #tpu.memory_space<vmem>>, vector<1x8x128xf32>
    %62 = vector.shape_cast %61 : vector<1x8x128xf32> to vector<8x128xf32>
    %63 = vector.shape_cast %59 : vector<8x128xf32> to vector<1x8x128xf32>
    tpu.vector_store %arg8[%60, %c0_38, %c0_39], %63 {strides = array<i32>} : memref<8x8x128xf32, #tpu.memory_space<vmem>>, vector<1x8x128xf32>,
    %c5_i32 = arith.constant 5 : i32
    %cst_40 = arith.constant dense<0.000000e+00> : vector<8x128xf32>
    %64 = tpu.matmul %59, %12, %cst_40 {dimension_numbers = #tpu.dot_dimension_numbers<[1], [0], [0], [1], [0, 0, 1, 1], [], []>} : vector<8x128xf32>, vector<128x128xf32>, vector<8x128xf32> -> vector<8x128xf32>
    %65 = arith.index_cast %c5_i32 : i32 to index
    %c0_41 = arith.constant 0 : index
    %c0_42 = arith.constant 0 : index
    %66 = vector.load %arg11[%65, %c0_41, %c0_42] : memref<8x8x128xf32, #tpu.memory_space<vmem>>, vector<1x8x128xf32>
    %67 = vector.shape_cast %66 : vector<1x8x128xf32> to vector<8x128xf32>
    %68 = arith.addf %64, %67 : vector<8x128xf32>
    %69 = math.tanh %68 : vector<8x128xf32>
    %70 = arith.index_cast %c5_i32 : i32 to index
    %c0_43 = arith.constant 0 : index
    %c0_44 = arith.constant 0 : index
    %71 = vector.load %arg8[%70, %c0_43, %c0_44] : memref<8x8x128xf32, #tpu.memory_space<vmem>>, vector<1x8x128xf32>
    %72 = vector.shape_cast %71 : vector<1x8x128xf32> to vector<8x128xf32>
    %73 = vector.shape_cast %69 : vector<8x128xf32> to vector<1x8x128xf32>
    tpu.vector_store %arg8[%70, %c0_43, %c0_44], %73 {strides = array<i32>} : memref<8x8x128xf32, #tpu.memory_space<vmem>>, vector<1x8x128xf32>,
    %c6_i32 = arith.constant 6 : i32
    %cst_45 = arith.constant dense<0.000000e+00> : vector<8x128xf32>
    %74 = tpu.matmul %69, %12, %cst_45 {dimension_numbers = #tpu.dot_dimension_numbers<[1], [0], [0], [1], [0, 0, 1, 1], [], []>} : vector<8x128xf32>, vector<128x128xf32>, vector<8x128xf32> -> vector<8x128xf32>
    %75 = arith.index_cast %c6_i32 : i32 to index
    %c0_46 = arith.constant 0 : index
    %c0_47 = arith.constant 0 : index
    %76 = vector.load %arg11[%75, %c0_46, %c0_47] : memref<8x8x128xf32, #tpu.memory_space<vmem>>, vector<1x8x128xf32>
    %77 = vector.shape_cast %76 : vector<1x8x128xf32> to vector<8x128xf32>
    %78 = arith.addf %74, %77 : vector<8x128xf32>
    %79 = math.tanh %78 : vector<8x128xf32>
    %80 = arith.index_cast %c6_i32 : i32 to index
    %c0_48 = arith.constant 0 : index
    %c0_49 = arith.constant 0 : index
    %81 = vector.load %arg8[%80, %c0_48, %c0_49] : memref<8x8x128xf32, #tpu.memory_space<vmem>>, vector<1x8x128xf32>
    %82 = vector.shape_cast %81 : vector<1x8x128xf32> to vector<8x128xf32>
    %83 = vector.shape_cast %79 : vector<8x128xf32> to vector<1x8x128xf32>
    tpu.vector_store %arg8[%80, %c0_48, %c0_49], %83 {strides = array<i32>} : memref<8x8x128xf32, #tpu.memory_space<vmem>>, vector<1x8x128xf32>,
    %c7_i32 = arith.constant 7 : i32
    %cst_50 = arith.constant dense<0.000000e+00> : vector<8x128xf32>
    %84 = tpu.matmul %79, %12, %cst_50 {dimension_numbers = #tpu.dot_dimension_numbers<[1], [0], [0], [1], [0, 0, 1, 1], [], []>} : vector<8x128xf32>, vector<128x128xf32>, vector<8x128xf32> -> vector<8x128xf32>
    %85 = arith.index_cast %c7_i32 : i32 to index
    %c0_51 = arith.constant 0 : index
    %c0_52 = arith.constant 0 : index
    %86 = vector.load %arg11[%85, %c0_51, %c0_52] : memref<8x8x128xf32, #tpu.memory_space<vmem>>, vector<1x8x128xf32>
    %87 = vector.shape_cast %86 : vector<1x8x128xf32> to vector<8x128xf32>
    %88 = arith.addf %84, %87 : vector<8x128xf32>
    %89 = math.tanh %88 : vector<8x128xf32>
    %90 = arith.index_cast %c7_i32 : i32 to index
    %c0_53 = arith.constant 0 : index
    %c0_54 = arith.constant 0 : index
    %91 = vector.load %arg8[%90, %c0_53, %c0_54] : memref<8x8x128xf32, #tpu.memory_space<vmem>>, vector<1x8x128xf32>
    %92 = vector.shape_cast %91 : vector<1x8x128xf32> to vector<8x128xf32>
    %93 = vector.shape_cast %89 : vector<8x128xf32> to vector<1x8x128xf32>
    tpu.vector_store %arg8[%90, %c0_53, %c0_54], %93 {strides = array<i32>} : memref<8x8x128xf32, #tpu.memory_space<vmem>>, vector<1x8x128xf32>,
    %c8_i32 = arith.constant 8 : i32
    %c0_55 = arith.constant 0 : index
    %c0_56 = arith.constant 0 : index
    %94 = vector.load %arg10[%c0_55, %c0_56] : memref<8x128xf32, #tpu.memory_space<vmem>>, vector<8x128xf32>
    tpu.vector_store %arg10[%c0_55, %c0_56], %89 {strides = array<i32>} : memref<8x128xf32, #tpu.memory_space<vmem>>, vector<8x128xf32>,
    %c0_i32_57 = arith.constant 0 : i32
    %95 = arith.cmpi eq, %arg0, %c0_i32_57 : i32
    %96 = arith.extui %95 : i1 to i32
    %c0_i32_58 = arith.constant 0 : i32
    %97 = arith.cmpi ne, %96, %c0_i32_58 : i32
    scf.if %97 {
      %c0_59 = arith.constant 0 : index
      %c0_60 = arith.constant 0 : index
      %98 = vector.load %arg6[%c0_59, %c0_60] : memref<128x128xf32, #tpu.memory_space<vmem>>, vector<128x128xf32>
      %cst_61 = arith.constant dense<0.000000e+00> : vector<8x128xf32>
      %99 = tpu.matmul %89, %98, %cst_61 {dimension_numbers = #tpu.dot_dimension_numbers<[1], [0], [0], [1], [0, 0, 1, 1], [], []>} : vector<8x128xf32>, vector<128x128xf32>, vector<8x128xf32> -> vector<8x128xf32>
      %c0_62 = arith.constant 0 : index
      %c0_63 = arith.constant 0 : index
      %100 = vector.load %arg7[%c0_62, %c0_63] : memref<1x128xf32, #tpu.memory_space<vmem>>, vector<1x128xf32>
      %101 = vector.broadcast %100 : vector<1x128xf32> to vector<8x128xf32>
      %102 = arith.addf %99, %101 : vector<8x128xf32>
      %c0_64 = arith.constant 0 : index
      %c0_65 = arith.constant 0 : index
      %103 = vector.load %arg9[%c0_64, %c0_65] : memref<8x128xf32, #tpu.memory_space<vmem>>, vector<8x128xf32>
      tpu.vector_store %arg9[%c0_64, %c0_65], %102 {strides = array<i32>} : memref<8x128xf32, #tpu.memory_space<vmem>>, vector<8x128xf32>,
    } else {
    }
    return
  }
  func.func @transform_0(%arg0: i32) -> (i32, i32, i32) {
    %c0_i32 = arith.constant 0 : i32
    %c0_i32_0 = arith.constant 0 : i32
    %c0_i32_1 = arith.constant 0 : i32
    return %arg0, %c0_i32, %c0_i32_0 : i32, i32, i32
  }
  func.func @transform_1(%arg0: i32) -> (i32, i32) {
    %c0_i32 = arith.constant 0 : i32
    %c0_i32_0 = arith.constant 0 : i32
    %c0_i32_1 = arith.constant 0 : i32
    return %c0_i32, %c0_i32_0 : i32, i32
  }
  func.func @transform_2(%arg0: i32) -> (i32, i32) {
    %c0_i32 = arith.constant 0 : i32
    %c0_i32_0 = arith.constant 0 : i32
    %c0_i32_1 = arith.constant 0 : i32
    return %c0_i32, %c0_i32_0 : i32, i32
  }
  func.func @transform_3(%arg0: i32) -> (i32, i32) {
    %c0_i32 = arith.constant 0 : i32
    %c0_i32_0 = arith.constant 0 : i32
    %c0_i32_1 = arith.constant 0 : i32
    return %c0_i32, %c0_i32_0 : i32, i32
  }
  func.func @transform_4(%arg0: i32) -> (i32, i32) {
    %c0_i32 = arith.constant 0 : i32
    %c0_i32_0 = arith.constant 0 : i32
    %c0_i32_1 = arith.constant 0 : i32
    return %c0_i32, %c0_i32_0 : i32, i32
  }
  func.func @transform_5(%arg0: i32) -> (i32, i32) {
    %c0_i32 = arith.constant 0 : i32
    %c0_i32_0 = arith.constant 0 : i32
    %c0_i32_1 = arith.constant 0 : i32
    return %c0_i32, %c0_i32_0 : i32, i32
  }
  func.func @transform_6(%arg0: i32) -> (i32, i32) {
    %c0_i32 = arith.constant 0 : i32
    %c0_i32_0 = arith.constant 0 : i32
    %c0_i32_1 = arith.constant 0 : i32
    return %c0_i32, %c0_i32_0 : i32, i32
  }
  func.func @transform_7(%arg0: i32) -> (i32, i32, i32) {
    %c0_i32 = arith.constant 0 : i32
    %c0_i32_0 = arith.constant 0 : i32
    %c0_i32_1 = arith.constant 0 : i32
    return %arg0, %c0_i32, %c0_i32_0 : i32, i32, i32
  }
  func.func @transform_8(%arg0: i32) -> (i32, i32) {
    %c0_i32 = arith.constant 0 : i32
    %c0_i32_0 = arith.constant 0 : i32
    %c0_i32_1 = arith.constant 0 : i32
    return %c0_i32, %c0_i32_0 : i32, i32
  }
}

</mosaic_0001>

<llo_original>
// kernel: tpu_custom_call.1
$region0: #{tpu_custom_call.1}
  #allocation0 [shape = 'u32[]', space=smem, size = 0x4, offset = 0x4, fixed_abs, tag = 'smem constant byte address 0x4 - core index']
  #allocation1 [shape = 'u32[144,128]{1,0:T(1,128)}', space=vmem, size = 0x12000, scoped, tag = 'internal scratch']
  #allocation2 [shape = 'f32[8,128]{1,0:T(8,128)}', space=vmem, size = 0x1000, scoped, tag = 'scratch operand']
  #allocation3 [shape = 'f32[8,8,128]{2,1,0:T(8,128)}', space=vmem, size = 0x8000, scoped, tag = 'scratch operand']
  %s0 = inlined_call_operand.hbm [shape: f32[8,8,128], index: 0, kind: input, shape index: {}]
  %s1 = inlined_call_operand.hbm [shape: f32[128,128], index: 1, kind: input, shape index: {}]
  %s2 = inlined_call_operand.vmem [shape: f32[1,128], index: 2, kind: input, shape index: {}]
  %s3 = inlined_call_operand.hbm [shape: f32[128,128], index: 3, kind: input, shape index: {}]
  %s4 = inlined_call_operand.hbm [shape: f32[8,128], index: 4, kind: input, shape index: {}]
  %s5 = inlined_call_operand.hbm [shape: f32[128,128], index: 5, kind: input, shape index: {}]
  %s6 = inlined_call_operand.vmem [shape: f32[1,128], index: 6, kind: input, shape index: {}]
  %s7 = inlined_call_operand.hbm [shape: f32[8,8,128], index: 7, kind: output, shape index: {0}]
  %s8 = inlined_call_operand.hbm [shape: f32[8,128], index: 8, kind: output, shape index: {1}]
  %9 = xla_tuple %s7, %s8
  %s10 = sld [smem:[#allocation0]]
  $region74: #{tpu_custom_call.1} parent=0
    _
  %s12 = ssub.s32 1, %s10
  %s13 = scalar_select 0, %s12, %s10
  $region1: #{tpu_custom_call.1} parent=0
    #allocation4 [shape = 'u8[32768]{0}', space=vmem, size = 0x8000, scoped, tag = 'input window, operand 0, single buffered']
    #allocation5 [shape = 's32[1]{0}', space=sflag, size = 0x4, scoped, tag = 'scoped memory for tpu_custom_call.1']
    #allocation6 [shape = 's32[1]{0}', space=sflag, size = 0x4, scoped, tag = 'scoped memory for tpu_custom_call.1']
    #allocation7 [shape = 'u8[65536]{0}', space=vmem, size = 0x10000, scoped, tag = 'input window, operand 1, single buffered']
    #allocation8 [shape = 's32[1]{0}', space=sflag, size = 0x4, scoped, tag = 'scoped memory for tpu_custom_call.1']
    #allocation9 [shape = 'u8[65536]{0}', space=vmem, size = 0x10000, scoped, tag = 'input window, operand 3, single buffered']
    #allocation10 [shape = 'u8[4096]{0}', space=vmem, size = 0x1000, scoped, tag = 'input window, operand 4, single buffered']
    #allocation11 [shape = 's32[1]{0}', space=sflag, size = 0x4, scoped, tag = 'scoped memory for tpu_custom_call.1']
    #allocation12 [shape = 'u8[65536]{0}', space=vmem, size = 0x10000, scoped, tag = 'input window, operand 5, single buffered']
    #allocation13 [shape = 'u8[32768]{0}', space=vmem, size = 0x8000, scoped, tag = 'output window, operand 0, single buffered']
    #allocation14 [shape = 'u8[4096]{0}', space=vmem, size = 0x1000, scoped, tag = 'output window, operand 1, single buffered']
    #allocation15 [shape = 's32[1]{0}', space=sflag, size = 0x4, scoped, tag = 'scoped memory for tpu_custom_call.1']
    %14 = vsyncpa [#allocation5], 0
    %15 = vsyncpa [#allocation8], 0
    %16 = vsyncpa [#allocation11], 0
    %17 = vsyncpa [#allocation6], 0
    %18 = vsyncpa [#allocation15], 0
    // Predicated region
    $region2: #{tpu_custom_call.1} parent=1 // pred_check
      _
    $region3: #{tpu_custom_call.1} parent=1 // pred_check_branch
      %20 = sbr.rel (0) target = $region5
    $region4: #{tpu_custom_call.1} parent=1 // pred_region
      %s22 = ssub.s32 1024, 1024
      %23 = vsyncadd [#allocation5], %s22
      %s24 = sshll.u32 [#allocation4], 4
      %s25 = int_to_ptr.vmem [resolvable:$true] %s24
      %30 = dma.hbm_to_vmem [thread:$0]  %s0, 1024, %s25, [#allocation5], 128, 128, 8
    $region5: #{tpu_custom_call.1} parent=1 // pred_fallthru
      _
    // Predicated region
    $region6: #{tpu_custom_call.1} parent=1 // pred_check
      _
    $region7: #{tpu_custom_call.1} parent=1 // pred_check_branch
      %32 = sbr.rel (0) target = $region9
    $region8: #{tpu_custom_call.1} parent=1 // pred_region
      %s34 = ssub.s32 2048, 2048
      %35 = vsyncadd [#allocation8], %s34
      %s36 = sshll.u32 [#allocation7], 4
      %s37 = int_to_ptr.vmem [resolvable:$true] %s36
      %42 = dma.hbm_to_vmem [thread:$0]  %s1, 2048, %s37, [#allocation8], 128, 128, 8
    $region9: #{tpu_custom_call.1} parent=1 // pred_fallthru
      _
    // Predicated region
    $region10: #{tpu_custom_call.1} parent=1 // pred_check
      _
    $region11: #{tpu_custom_call.1} parent=1 // pred_check_branch
      %44 = sbr.rel (0) target = $region13
    $region12: #{tpu_custom_call.1} parent=1 // pred_region
      _
    $region13: #{tpu_custom_call.1} parent=1 // pred_fallthru
      _
    // Predicated region
    $region14: #{tpu_custom_call.1} parent=1 // pred_check
      _
    $region15: #{tpu_custom_call.1} parent=1 // pred_check_branch
      %46 = sbr.rel (0) target = $region17
    $region16: #{tpu_custom_call.1} parent=1 // pred_region
      %s48 = ssub.s32 2048, 2048
      %49 = vsyncadd [#allocation8], %s48
      %s50 = sshll.u32 [#allocation9], 4
      %s51 = int_to_ptr.vmem [resolvable:$true] %s50
      %56 = dma.hbm_to_vmem [thread:$0]  %s3, 2048, %s51, [#allocation8], 128, 128, 8
    $region17: #{tpu_custom_call.1} parent=1 // pred_fallthru
      _
    // Predicated region
    $region18: #{tpu_custom_call.1} parent=1 // pred_check
      _
    $region19: #{tpu_custom_call.1} parent=1 // pred_check_branch
      %58 = sbr.rel (0) target = $region21
    $region20: #{tpu_custom_call.1} parent=1 // pred_region
      %s60 = ssub.s32 128, 128
      %61 = vsyncadd [#allocation11], %s60
      %s63 = sshll.u32 [#allocation10], 4
      %s64 = int_to_ptr.vmem [resolvable:$true] %s63
      %66 = dma.hbm_to_vmem [thread:$0]  %s4, 128, %s64, [#allocation11]
    $region21: #{tpu_custom_call.1} parent=1 // pred_fallthru
      _
    // Predicated region
    $region22: #{tpu_custom_call.1} parent=1 // pred_check
      _
    $region23: #{tpu_custom_call.1} parent=1 // pred_check_branch
      %68 = sbr.rel (0) target = $region25
    $region24: #{tpu_custom_call.1} parent=1 // pred_region
      %s70 = ssub.s32 2048, 2048
      %71 = vsyncadd [#allocation11], %s70
      %s72 = sshll.u32 [#allocation12], 4
      %s73 = int_to_ptr.vmem [resolvable:$true] %s72
      %78 = dma.hbm_to_vmem [thread:$0]  %s5, 2048, %s73, [#allocation11], 128, 128, 8
    $region25: #{tpu_custom_call.1} parent=1 // pred_fallthru
      _
    // Predicated region
    $region26: #{tpu_custom_call.1} parent=1 // pred_check
      _
    $region27: #{tpu_custom_call.1} parent=1 // pred_check_branch
      %80 = sbr.rel (0) target = $region29
    $region28: #{tpu_custom_call.1} parent=1 // pred_region
      _
    $region29: #{tpu_custom_call.1} parent=1 // pred_fallthru
      _
    // Predicated region
    $region30: #{tpu_custom_call.1} parent=1 // pred_check
      _
    $region31: #{tpu_custom_call.1} parent=1 // pred_check_branch
      %82 = sbr.rel (0) target = $region33
    $region32: #{tpu_custom_call.1} parent=1 // pred_region
      %83 = dma.done [#allocation5], 1024
    $region33: #{tpu_custom_call.1} parent=1 // pred_fallthru
      _
    // Predicated region
    $region34: #{tpu_custom_call.1} parent=1 // pred_check
      _
    $region35: #{tpu_custom_call.1} parent=1 // pred_check_branch
      %85 = sbr.rel (0) target = $region37
    $region36: #{tpu_custom_call.1} parent=1 // pred_region
      %86 = dma.done [#allocation8], 2048
    $region37: #{tpu_custom_call.1} parent=1 // pred_fallthru
      _
    // Predicated region
    $region38: #{tpu_custom_call.1} parent=1 // pred_check
      _
    $region39: #{tpu_custom_call.1} parent=1 // pred_check_branch
      %88 = sbr.rel (0) target = $region41
    $region40: #{tpu_custom_call.1} parent=1 // pred_region
      %89 = dma.done [#allocation8], 2048
    $region41: #{tpu_custom_call.1} parent=1 // pred_fallthru
      _
    // Predicated region
    $region42: #{tpu_custom_call.1} parent=1 // pred_check
      _
    $region43: #{tpu_custom_call.1} parent=1 // pred_check_branch
      %91 = sbr.rel (0) target = $region45
    $region44: #{tpu_custom_call.1} parent=1 // pred_region
      %92 = dma.done [#allocation11], 128
    $region45: #{tpu_custom_call.1} parent=1 // pred_fallthru
      _
    // Predicated region
    $region46: #{tpu_custom_call.1} parent=1 // pred_check
      _
    $region47: #{tpu_custom_call.1} parent=1 // pred_check_branch
      %94 = sbr.rel (0) target = $region49
    $region48: #{tpu_custom_call.1} parent=1 // pred_region
      %95 = dma.done [#allocation11], 2048
    $region49: #{tpu_custom_call.1} parent=1 // pred_fallthru
      _
    %p96 = scmp.eq.s32.totalorder 0, 0
    // Predicated region
    $region50: #{tpu_custom_call.1} parent=1 // pred_check
      %p97 = pneg %p96
    $region51: #{tpu_custom_call.1} parent=1 // pred_check_branch
      %99 = sbr.rel (%p97) target = $region53
    $region52: #{tpu_custom_call.1} parent=1 // pred_region
      %v100 = vld [vmem:[#allocation10] sm:$0xff]
      %101 = vst [vmem:[#allocation2] sm:$0xff] %v100
    $region53: #{tpu_custom_call.1} parent=1 // pred_fallthru
      _
    %v102 = vld [vmem:[#allocation4] sm:$0xff]
    %v103 = vld [vmem:[#allocation4 + $0x8] sm:$0xff]
    %v104 = vld [vmem:[#allocation4 + $0x10] sm:$0xff]
    %v105 = vld [vmem:[#allocation4 + $0x18] sm:$0xff]
    %v106 = vld [vmem:[#allocation4 + $0x20] sm:$0xff]
    %v107 = vld [vmem:[#allocation4 + $0x28] sm:$0xff]
    %v108 = vld [vmem:[#allocation4 + $0x30] sm:$0xff]
    %v109 = vld [vmem:[#allocation4 + $0x38] sm:$0xff]
    %v110 = vld [vmem:[#allocation7] sm:$0xff]
    %v111 = vld [vmem:[#allocation7 + $0x8] sm:$0xff]
    %v112 = vld [vmem:[#allocation7 + $0x10] sm:$0xff]
    %v113 = vld [vmem:[#allocation7 + $0x18] sm:$0xff]
    %v114 = vld [vmem:[#allocation7 + $0x20] sm:$0xff]
    %v115 = vld [vmem:[#allocation7 + $0x28] sm:$0xff]
    %v116 = vld [vmem:[#allocation7 + $0x30] sm:$0xff]
    %v117 = vld [vmem:[#allocation7 + $0x38] sm:$0xff]
    %v118 = vld [vmem:[#allocation7 + $0x40] sm:$0xff]
    %v119 = vld [vmem:[#allocation7 + $0x48] sm:$0xff]
    %v120 = vld [vmem:[#allocation7 + $0x50] sm:$0xff]
    %v121 = vld [vmem:[#allocation7 + $0x58] sm:$0xff]
    %v122 = vld [vmem:[#allocation7 + $0x60] sm:$0xff]
    %v123 = vld [vmem:[#allocation7 + $0x68] sm:$0xff]
    %v124 = vld [vmem:[#allocation7 + $0x70] sm:$0xff]
    %v125 = vld [vmem:[#allocation7 + $0x78] sm:$0xff]
    %v126 = vld [vmem:[%s2] sm:$0x1]
    %v128 = vlaneseq
    %v129 = vshrl.u32 %v128, 7
    %v130 = vsub.s32 0, %v129
    %v131 = vrot.slane %v126, %v130
    %133 = vmatprep.subr.mxu0 0.0
    %134 = vmatpush1.msra.mxu0 %v125
    %135 = vmatprep.subr.mxu0 0.0
    %136 = vmatpush1.msra.mxu0 %v124
    %137 = vmatprep.subr.mxu0 0.0
    %138 = vmatpush1.msra.mxu0 %v123
    %139 = vmatprep.subr.mxu0 0.0
    %140 = vmatpush1.msra.mxu0 %v122
    %141 = vmatprep.subr.mxu0 0.0
    %142 = vmatpush1.msra.mxu0 %v121
    %143 = vmatprep.subr.mxu0 0.0
    %144 = vmatpush1.msra.mxu0 %v120
    %145 = vmatprep.subr.mxu0 0.0
    %146 = vmatpush1.msra.mxu0 %v119
    %147 = vmatprep.subr.mxu0 0.0
    %148 = vmatpush1.msra.mxu0 %v118
    %149 = vmatprep.subr.mxu0 0.0
    %150 = vmatpush1.msra.mxu0 %v117
    %151 = vmatprep.subr.mxu0 0.0
    %152 = vmatpush1.msra.mxu0 %v116
    %153 = vmatprep.subr.mxu0 0.0
    %154 = vmatpush1.msra.mxu0 %v115
    %155 = vmatprep.subr.mxu0 0.0
    %156 = vmatpush1.msra.mxu0 %v114
    %157 = vmatprep.subr.mxu0 0.0
    %158 = vmatpush1.msra.mxu0 %v113
    %159 = vmatprep.subr.mxu0 0.0
    %160 = vmatpush1.msra.mxu0 %v112
    %161 = vmatprep.subr.mxu0 0.0
    %162 = vmatpush1.msra.mxu0 %v111
    %163 = vmatprep.subr.mxu0 0.0
    %164 = vmatpush1.msra.mxu0 %v110
    %165 = vmatprep.subr.mxu0 0.0
    %166 = vmatpush2.msra.mxu0 0.0
    %167 = vmatprep.subr.mxu0 0.0
    %168 = vmatpush2.msra.mxu0 0.0
    %169 = vmatprep.subr.mxu0 0.0
    %170 = vmatpush2.msra.mxu0 0.0
    %171 = vmatprep.subr.mxu0 0.0
    %172 = vmatpush2.msra.mxu0 0.0
    %173 = vmatprep.subr.mxu0 0.0
    %174 = vmatpush2.msra.mxu0 0.0
    %175 = vmatprep.subr.mxu0 0.0
    %176 = vmatpush2.msra.mxu0 0.0
    %177 = vmatprep.subr.mxu0 0.0
    %178 = vmatpush2.msra.mxu0 0.0
    %179 = vmatprep.subr.mxu0 0.0
    %180 = vmatpush2.msra.mxu0 0.0
    %181 = vmatprep.subr.mxu0 0.0
    %182 = vmatpush2.msra.mxu0 0.0
    %183 = vmatprep.subr.mxu0 0.0
    %184 = vmatpush2.msra.mxu0 0.0
    %185 = vmatprep.subr.mxu0 0.0
    %186 = vmatpush2.msra.mxu0 0.0
    %187 = vmatprep.subr.mxu0 0.0
    %188 = vmatpush2.msra.mxu0 0.0
    %189 = vmatprep.subr.mxu0 0.0
    %190 = vmatpush2.msra.mxu0 0.0
    %191 = vmatprep.subr.mxu0 0.0
    %192 = vmatpush2.msra.mxu0 0.0
    %193 = vmatprep.subr.mxu0 0.0
    %194 = vmatpush2.msra.mxu0 0.0
    %195 = vmatprep.subr.mxu0 0.0
    %196 = vmatpush2.msra.mxu0 0.0
    %197 = vmatprep.mubr.f32.mxu0 0.0
    %198 = vmatmul.mubr.f32.gmra.mxu0 %v102
    %v199 = vpop.f32.mrf.mxu0
    %v200 = vadd.f32 %v131, %v199
    %v201 = vpop.f32.mrf.mxu0
    %202 = vmatprep.mubr.f32.mxu0 0.0
    %203 = vmatmul.mubr.f32.gmra.mxu0 %v103
    %v204 = vpop.f32.mrf.mxu0
    %v205 = vadd.f32 %v131, %v204
    %v206 = vpop.f32.mrf.mxu0
    %207 = vmatprep.mubr.f32.mxu0 0.0
    %208 = vmatmul.mubr.f32.gmra.mxu0 %v104
    %v209 = vpop.f32.mrf.mxu0
    %v210 = vadd.f32 %v131, %v209
    %v211 = vpop.f32.mrf.mxu0
    %212 = vmatprep.mubr.f32.mxu0 0.0
    %213 = vmatmul.mubr.f32.gmra.mxu0 %v105
    %v214 = vpop.f32.mrf.mxu0
    %v215 = vadd.f32 %v131, %v214
    %v216 = vpop.f32.mrf.mxu0
    %217 = vmatprep.mubr.f32.mxu0 0.0
    %218 = vmatmul.mubr.f32.gmra.mxu0 %v106
    %v219 = vpop.f32.mrf.mxu0
    %v220 = vadd.f32 %v131, %v219
    %v221 = vpop.f32.mrf.mxu0
    %222 = vmatprep.mubr.f32.mxu0 0.0
    %223 = vmatmul.mubr.f32.gmra.mxu0 %v107
    %v224 = vpop.f32.mrf.mxu0
    %v225 = vadd.f32 %v131, %v224
    %v226 = vpop.f32.mrf.mxu0
    %227 = vmatprep.mubr.f32.mxu0 0.0
    %228 = vmatmul.mubr.f32.gmra.mxu0 %v108
    %v229 = vpop.f32.mrf.mxu0
    %v230 = vadd.f32 %v131, %v229
    %v231 = vpop.f32.mrf.mxu0
    %232 = vmatprep.mubr.f32.mxu0 0.0
    %233 = vmatmul.mubr.f32.gmra.mxu0 %v109
    %v234 = vpop.f32.mrf.mxu0
    %v235 = vadd.f32 %v131, %v234
    %v236 = vpop.f32.mrf.mxu0
    %237 = vdwg.mxu0
    %238 = vst [vmem:[#allocation3] sm:$0xff] %v200
    %239 = vst [vmem:[#allocation3 + $0x8] sm:$0xff] %v205
    %240 = vst [vmem:[#allocation3 + $0x10] sm:$0xff] %v210
    %241 = vst [vmem:[#allocation3 + $0x18] sm:$0xff] %v215
    %242 = vst [vmem:[#allocation3 + $0x20] sm:$0xff] %v220
    %243 = vst [vmem:[#allocation3 + $0x28] sm:$0xff] %v225
    %244 = vst [vmem:[#allocation3 + $0x30] sm:$0xff] %v230
    %245 = vst [vmem:[#allocation3 + $0x38] sm:$0xff] %v235
    %v246 = vld [vmem:[#allocation9] sm:$0xff]
    %v247 = vld [vmem:[#allocation9 + $0x8] sm:$0xff]
    %v248 = vld [vmem:[#allocation9 + $0x10] sm:$0xff]
    %v249 = vld [vmem:[#allocation9 + $0x18] sm:$0xff]
    %v250 = vld [vmem:[#allocation9 + $0x20] sm:$0xff]
    %v251 = vld [vmem:[#allocation9 + $0x28] sm:$0xff]
    %v252 = vld [vmem:[#allocation9 + $0x30] sm:$0xff]
    %v253 = vld [vmem:[#allocation9 + $0x38] sm:$0xff]
    %v254 = vld [vmem:[#allocation9 + $0x40] sm:$0xff]
    %v255 = vld [vmem:[#allocation9 + $0x48] sm:$0xff]
    %v256 = vld [vmem:[#allocation9 + $0x50] sm:$0xff]
    %v257 = vld [vmem:[#allocation9 + $0x58] sm:$0xff]
    %v258 = vld [vmem:[#allocation9 + $0x60] sm:$0xff]
    %v259 = vld [vmem:[#allocation9 + $0x68] sm:$0xff]
    %v260 = vld [vmem:[#allocation9 + $0x70] sm:$0xff]
    %v261 = vld [vmem:[#allocation9 + $0x78] sm:$0xff]
    %v262 = vld [vmem:[#allocation2] sm:$0xff]
    %v263 = vld [vmem:[#allocation3] sm:$0xff]
    %264 = vmatprep.subr.mxu0 0.0
    %265 = vmatpush1.msra.mxu0 %v261
    %266 = vmatprep.subr.mxu0 0.0
    %267 = vmatpush1.msra.mxu0 %v260
    %268 = vmatprep.subr.mxu0 0.0
    %269 = vmatpush1.msra.mxu0 %v259
    %270 = vmatprep.subr.mxu0 0.0
    %271 = vmatpush1.msra.mxu0 %v258
    %272 = vmatprep.subr.mxu0 0.0
    %273 = vmatpush1.msra.mxu0 %v257
    %274 = vmatprep.subr.mxu0 0.0
    %275 = vmatpush1.msra.mxu0 %v256
    %276 = vmatprep.subr.mxu0 0.0
    %277 = vmatpush1.msra.mxu0 %v255
    %278 = vmatprep.subr.mxu0 0.0
    %279 = vmatpush1.msra.mxu0 %v254
    %280 = vmatprep.subr.mxu0 0.0
    %281 = vmatpush1.msra.mxu0 %v253
    %282 = vmatprep.subr.mxu0 0.0
    %283 = vmatpush1.msra.mxu0 %v252
    %284 = vmatprep.subr.mxu0 0.0
    %285 = vmatpush1.msra.mxu0 %v251
    %286 = vmatprep.subr.mxu0 0.0
    %287 = vmatpush1.msra.mxu0 %v250
    %288 = vmatprep.subr.mxu0 0.0
    %289 = vmatpush1.msra.mxu0 %v249
    %290 = vmatprep.subr.mxu0 0.0
    %291 = vmatpush1.msra.mxu0 %v248
    %292 = vmatprep.subr.mxu0 0.0
    %293 = vmatpush1.msra.mxu0 %v247
    %294 = vmatprep.subr.mxu0 0.0
    %295 = vmatpush1.msra.mxu0 %v246
    %296 = vmatprep.subr.mxu0 0.0
    %297 = vmatpush2.msra.mxu0 0.0
    %298 = vmatprep.subr.mxu0 0.0
    %299 = vmatpush2.msra.mxu0 0.0
    %300 = vmatprep.subr.mxu0 0.0
    %301 = vmatpush2.msra.mxu0 0.0
    %302 = vmatprep.subr.mxu0 0.0
    %303 = vmatpush2.msra.mxu0 0.0
    %304 = vmatprep.subr.mxu0 0.0
    %305 = vmatpush2.msra.mxu0 0.0
    %306 = vmatprep.subr.mxu0 0.0
    %307 = vmatpush2.msra.mxu0 0.0
    %308 = vmatprep.subr.mxu0 0.0
    %309 = vmatpush2.msra.mxu0 0.0
    %310 = vmatprep.subr.mxu0 0.0
    %311 = vmatpush2.msra.mxu0 0.0
    %312 = vmatprep.subr.mxu0 0.0
    %313 = vmatpush2.msra.mxu0 0.0
    %314 = vmatprep.subr.mxu0 0.0
    %315 = vmatpush2.msra.mxu0 0.0
    %316 = vmatprep.subr.mxu0 0.0
    %317 = vmatpush2.msra.mxu0 0.0
    %318 = vmatprep.subr.mxu0 0.0
    %319 = vmatpush2.msra.mxu0 0.0
    %320 = vmatprep.subr.mxu0 0.0
    %321 = vmatpush2.msra.mxu0 0.0
    %322 = vmatprep.subr.mxu0 0.0
    %323 = vmatpush2.msra.mxu0 0.0
    %324 = vmatprep.subr.mxu0 0.0
    %325 = vmatpush2.msra.mxu0 0.0
    %326 = vmatprep.subr.mxu0 0.0
    %327 = vmatpush2.msra.mxu0 0.0
    %328 = vmatprep.mubr.f32.mxu0 0.0
    %329 = vmatmul.mubr.f32.gmra.mxu0 %v262
    %v330 = vpop.f32.mrf.mxu0
    %v331 = vadd.f32 %v263, %v330
    %v332 = vpop.f32.mrf.mxu0
    %333 = vdwg.mxu0
    %v334 = vtanh.pop %v331
    %335 = vst [vmem:[#allocation13] sm:$0xff] %v334
    %s336 = scalar_lea.vmem [#allocation3], 8
    %v337 = vld [vmem:[%s336] sm:$0xff]
    %338 = vmatprep.subr.mxu0 0.0
    %339 = vmatpush1.msra.mxu0 %v261
    %340 = vmatprep.subr.mxu0 0.0
    %341 = vmatpush1.msra.mxu0 %v260
    %342 = vmatprep.subr.mxu0 0.0
    %343 = vmatpush1.msra.mxu0 %v259
    %344 = vmatprep.subr.mxu0 0.0
    %345 = vmatpush1.msra.mxu0 %v258
    %346 = vmatprep.subr.mxu0 0.0
    %347 = vmatpush1.msra.mxu0 %v257
    %348 = vmatprep.subr.mxu0 0.0
    %349 = vmatpush1.msra.mxu0 %v256
    %350 = vmatprep.subr.mxu0 0.0
    %351 = vmatpush1.msra.mxu0 %v255
    %352 = vmatprep.subr.mxu0 0.0
    %353 = vmatpush1.msra.mxu0 %v254
    %354 = vmatprep.subr.mxu0 0.0
    %355 = vmatpush1.msra.mxu0 %v253
    %356 = vmatprep.subr.mxu0 0.0
    %357 = vmatpush1.msra.mxu0 %v252
    %358 = vmatprep.subr.mxu0 0.0
    %359 = vmatpush1.msra.mxu0 %v251
    %360 = vmatprep.subr.mxu0 0.0
    %361 = vmatpush1.msra.mxu0 %v250
    %362 = vmatprep.subr.mxu0 0.0
    %363 = vmatpush1.msra.mxu0 %v249
    %364 = vmatprep.subr.mxu0 0.0
    %365 = vmatpush1.msra.mxu0 %v248
    %366 = vmatprep.subr.mxu0 0.0
    %367 = vmatpush1.msra.mxu0 %v247
    %368 = vmatprep.subr.mxu0 0.0
    %369 = vmatpush1.msra.mxu0 %v246
    %370 = vmatprep.subr.mxu0 0.0
    %371 = vmatpush2.msra.mxu0 0.0
    %372 = vmatprep.subr.mxu0 0.0
    %373 = vmatpush2.msra.mxu0 0.0
    %374 = vmatprep.subr.mxu0 0.0
    %375 = vmatpush2.msra.mxu0 0.0
    %376 = vmatprep.subr.mxu0 0.0
    %377 = vmatpush2.msra.mxu0 0.0
    %378 = vmatprep.subr.mxu0 0.0
    %379 = vmatpush2.msra.mxu0 0.0
    %380 = vmatprep.subr.mxu0 0.0
    %381 = vmatpush2.msra.mxu0 0.0
    %382 = vmatprep.subr.mxu0 0.0
    %383 = vmatpush2.msra.mxu0 0.0
    %384 = vmatprep.subr.mxu0 0.0
    %385 = vmatpush2.msra.mxu0 0.0
    %386 = vmatprep.subr.mxu0 0.0
    %387 = vmatpush2.msra.mxu0 0.0
    %388 = vmatprep.subr.mxu0 0.0
    %389 = vmatpush2.msra.mxu0 0.0
    %390 = vmatprep.subr.mxu0 0.0
    %391 = vmatpush2.msra.mxu0 0.0
    %392 = vmatprep.subr.mxu0 0.0
    %393 = vmatpush2.msra.mxu0 0.0
    %394 = vmatprep.subr.mxu0 0.0
    %395 = vmatpush2.msra.mxu0 0.0
    %396 = vmatprep.subr.mxu0 0.0
    %397 = vmatpush2.msra.mxu0 0.0
    %398 = vmatprep.subr.mxu0 0.0
    %399 = vmatpush2.msra.mxu0 0.0
    %400 = vmatprep.subr.mxu0 0.0
    %401 = vmatpush2.msra.mxu0 0.0
    %402 = vmatprep.mubr.f32.mxu0 0.0
    %403 = vmatmul.mubr.f32.gmra.mxu0 %v334
    %v404 = vpop.f32.mrf.mxu0
    %v405 = vadd.f32 %v337, %v404
    %v406 = vpop.f32.mrf.mxu0
    %407 = vdwg.mxu0
    %v408 = vtanh.pop %v405
    %s409 = scalar_lea.vmem [#allocation13], 8
    %410 = vst [vmem:[%s409] sm:$0xff] %v408
    %s411 = scalar_lea.vmem [#allocation3], 16
    %v412 = vld [vmem:[%s411] sm:$0xff]
    %413 = vmatprep.subr.mxu0 0.0
    %414 = vmatpush1.msra.mxu0 %v261
    %415 = vmatprep.subr.mxu0 0.0
    %416 = vmatpush1.msra.mxu0 %v260
    %417 = vmatprep.subr.mxu0 0.0
    %418 = vmatpush1.msra.mxu0 %v259
    %419 = vmatprep.subr.mxu0 0.0
    %420 = vmatpush1.msra.mxu0 %v258
    %421 = vmatprep.subr.mxu0 0.0
    %422 = vmatpush1.msra.mxu0 %v257
    %423 = vmatprep.subr.mxu0 0.0
    %424 = vmatpush1.msra.mxu0 %v256
    %425 = vmatprep.subr.mxu0 0.0
    %426 = vmatpush1.msra.mxu0 %v255
    %427 = vmatprep.subr.mxu0 0.0
    %428 = vmatpush1.msra.mxu0 %v254
    %429 = vmatprep.subr.mxu0 0.0
    %430 = vmatpush1.msra.mxu0 %v253
    %431 = vmatprep.subr.mxu0 0.0
    %432 = vmatpush1.msra.mxu0 %v252
    %433 = vmatprep.subr.mxu0 0.0
    %434 = vmatpush1.msra.mxu0 %v251
    %435 = vmatprep.subr.mxu0 0.0
    %436 = vmatpush1.msra.mxu0 %v250
    %437 = vmatprep.subr.mxu0 0.0
    %438 = vmatpush1.msra.mxu0 %v249
    %439 = vmatprep.subr.mxu0 0.0
    %440 = vmatpush1.msra.mxu0 %v248
    %441 = vmatprep.subr.mxu0 0.0
    %442 = vmatpush1.msra.mxu0 %v247
    %443 = vmatprep.subr.mxu0 0.0
    %444 = vmatpush1.msra.mxu0 %v246
    %445 = vmatprep.subr.mxu0 0.0
    %446 = vmatpush2.msra.mxu0 0.0
    %447 = vmatprep.subr.mxu0 0.0
    %448 = vmatpush2.msra.mxu0 0.0
    %449 = vmatprep.subr.mxu0 0.0
    %450 = vmatpush2.msra.mxu0 0.0
    %451 = vmatprep.subr.mxu0 0.0
    %452 = vmatpush2.msra.mxu0 0.0
    %453 = vmatprep.subr.mxu0 0.0
    %454 = vmatpush2.msra.mxu0 0.0
    %455 = vmatprep.subr.mxu0 0.0
    %456 = vmatpush2.msra.mxu0 0.0
    %457 = vmatprep.subr.mxu0 0.0
    %458 = vmatpush2.msra.mxu0 0.0
    %459 = vmatprep.subr.mxu0 0.0
    %460 = vmatpush2.msra.mxu0 0.0
    %461 = vmatprep.subr.mxu0 0.0
    %462 = vmatpush2.msra.mxu0 0.0
    %463 = vmatprep.subr.mxu0 0.0
    %464 = vmatpush2.msra.mxu0 0.0
    %465 = vmatprep.subr.mxu0 0.0
    %466 = vmatpush2.msra.mxu0 0.0
    %467 = vmatprep.subr.mxu0 0.0
    %468 = vmatpush2.msra.mxu0 0.0
    %469 = vmatprep.subr.mxu0 0.0
    %470 = vmatpush2.msra.mxu0 0.0
    %471 = vmatprep.subr.mxu0 0.0
    %472 = vmatpush2.msra.mxu0 0.0
    %473 = vmatprep.subr.mxu0 0.0
    %474 = vmatpush2.msra.mxu0 0.0
    %475 = vmatprep.subr.mxu0 0.0
    %476 = vmatpush2.msra.mxu0 0.0
    %477 = vmatprep.mubr.f32.mxu0 0.0
    %478 = vmatmul.mubr.f32.gmra.mxu0 %v408
    %v479 = vpop.f32.mrf.mxu0
    %v480 = vadd.f32 %v412, %v479
    %v481 = vpop.f32.mrf.mxu0
    %482 = vdwg.mxu0
    %v483 = vtanh.pop %v480
    %s484 = scalar_lea.vmem [#allocation13], 16
    %485 = vst [vmem:[%s484] sm:$0xff] %v483
    %s486 = scalar_lea.vmem [#allocation3], 24
    %v487 = vld [vmem:[%s486] sm:$0xff]
    %488 = vmatprep.subr.mxu0 0.0
    %489 = vmatpush1.msra.mxu0 %v261
    %490 = vmatprep.subr.mxu0 0.0
    %491 = vmatpush1.msra.mxu0 %v260
    %492 = vmatprep.subr.mxu0 0.0
    %493 = vmatpush1.msra.mxu0 %v259
    %494 = vmatprep.subr.mxu0 0.0
    %495 = vmatpush1.msra.mxu0 %v258
    %496 = vmatprep.subr.mxu0 0.0
    %497 = vmatpush1.msra.mxu0 %v257
    %498 = vmatprep.subr.mxu0 0.0
    %499 = vmatpush1.msra.mxu0 %v256
    %500 = vmatprep.subr.mxu0 0.0
    %501 = vmatpush1.msra.mxu0 %v255
    %502 = vmatprep.subr.mxu0 0.0
    %503 = vmatpush1.msra.mxu0 %v254
    %504 = vmatprep.subr.mxu0 0.0
    %505 = vmatpush1.msra.mxu0 %v253
    %506 = vmatprep.subr.mxu0 0.0
    %507 = vmatpush1.msra.mxu0 %v252
    %508 = vmatprep.subr.mxu0 0.0
    %509 = vmatpush1.msra.mxu0 %v251
    %510 = vmatprep.subr.mxu0 0.0
    %511 = vmatpush1.msra.mxu0 %v250
    %512 = vmatprep.subr.mxu0 0.0
    %513 = vmatpush1.msra.mxu0 %v249
    %514 = vmatprep.subr.mxu0 0.0
    %515 = vmatpush1.msra.mxu0 %v248
    %516 = vmatprep.subr.mxu0 0.0
    %517 = vmatpush1.msra.mxu0 %v247
    %518 = vmatprep.subr.mxu0 0.0
    %519 = vmatpush1.msra.mxu0 %v246
    %520 = vmatprep.subr.mxu0 0.0
    %521 = vmatpush2.msra.mxu0 0.0
    %522 = vmatprep.subr.mxu0 0.0
    %523 = vmatpush2.msra.mxu0 0.0
    %524 = vmatprep.subr.mxu0 0.0
    %525 = vmatpush2.msra.mxu0 0.0
    %526 = vmatprep.subr.mxu0 0.0
    %527 = vmatpush2.msra.mxu0 0.0
    %528 = vmatprep.subr.mxu0 0.0
    %529 = vmatpush2.msra.mxu0 0.0
    %530 = vmatprep.subr.mxu0 0.0
    %531 = vmatpush2.msra.mxu0 0.0
    %532 = vmatprep.subr.mxu0 0.0
    %533 = vmatpush2.msra.mxu0 0.0
    %534 = vmatprep.subr.mxu0 0.0
    %535 = vmatpush2.msra.mxu0 0.0
    %536 = vmatprep.subr.mxu0 0.0
    %537 = vmatpush2.msra.mxu0 0.0
    %538 = vmatprep.subr.mxu0 0.0
    %539 = vmatpush2.msra.mxu0 0.0
    %540 = vmatprep.subr.mxu0 0.0
    %541 = vmatpush2.msra.mxu0 0.0
    %542 = vmatprep.subr.mxu0 0.0
    %543 = vmatpush2.msra.mxu0 0.0
    %544 = vmatprep.subr.mxu0 0.0
    %545 = vmatpush2.msra.mxu0 0.0
    %546 = vmatprep.subr.mxu0 0.0
    %547 = vmatpush2.msra.mxu0 0.0
    %548 = vmatprep.subr.mxu0 0.0
    %549 = vmatpush2.msra.mxu0 0.0
    %550 = vmatprep.subr.mxu0 0.0
    %551 = vmatpush2.msra.mxu0 0.0
    %552 = vmatprep.mubr.f32.mxu0 0.0
    %553 = vmatmul.mubr.f32.gmra.mxu0 %v483
    %v554 = vpop.f32.mrf.mxu0
    %v555 = vadd.f32 %v487, %v554
    %v556 = vpop.f32.mrf.mxu0
    %557 = vdwg.mxu0
    %v558 = vtanh.pop %v555
    %s559 = scalar_lea.vmem [#allocation13], 24
    %560 = vst [vmem:[%s559] sm:$0xff] %v558
    %s561 = scalar_lea.vmem [#allocation3], 32
    %v562 = vld [vmem:[%s561] sm:$0xff]
    %563 = vmatprep.subr.mxu0 0.0
    %564 = vmatpush1.msra.mxu0 %v261
    %565 = vmatprep.subr.mxu0 0.0
    %566 = vmatpush1.msra.mxu0 %v260
    %567 = vmatprep.subr.mxu0 0.0
    %568 = vmatpush1.msra.mxu0 %v259
    %569 = vmatprep.subr.mxu0 0.0
    %570 = vmatpush1.msra.mxu0 %v258
    %571 = vmatprep.subr.mxu0 0.0
    %572 = vmatpush1.msra.mxu0 %v257
    %573 = vmatprep.subr.mxu0 0.0
    %574 = vmatpush1.msra.mxu0 %v256
    %575 = vmatprep.subr.mxu0 0.0
    %576 = vmatpush1.msra.mxu0 %v255
    %577 = vmatprep.subr.mxu0 0.0
    %578 = vmatpush1.msra.mxu0 %v254
    %579 = vmatprep.subr.mxu0 0.0
    %580 = vmatpush1.msra.mxu0 %v253
    %581 = vmatprep.subr.mxu0 0.0
    %582 = vmatpush1.msra.mxu0 %v252
    %583 = vmatprep.subr.mxu0 0.0
    %584 = vmatpush1.msra.mxu0 %v251
    %585 = vmatprep.subr.mxu0 0.0
    %586 = vmatpush1.msra.mxu0 %v250
    %587 = vmatprep.subr.mxu0 0.0
    %588 = vmatpush1.msra.mxu0 %v249
    %589 = vmatprep.subr.mxu0 0.0
    %590 = vmatpush1.msra.mxu0 %v248
    %591 = vmatprep.subr.mxu0 0.0
    %592 = vmatpush1.msra.mxu0 %v247
    %593 = vmatprep.subr.mxu0 0.0
    %594 = vmatpush1.msra.mxu0 %v246
    %595 = vmatprep.subr.mxu0 0.0
    %596 = vmatpush2.msra.mxu0 0.0
    %597 = vmatprep.subr.mxu0 0.0
    %598 = vmatpush2.msra.mxu0 0.0
    %599 = vmatprep.subr.mxu0 0.0
    %600 = vmatpush2.msra.mxu0 0.0
    %601 = vmatprep.subr.mxu0 0.0
    %602 = vmatpush2.msra.mxu0 0.0
    %603 = vmatprep.subr.mxu0 0.0
    %604 = vmatpush2.msra.mxu0 0.0
    %605 = vmatprep.subr.mxu0 0.0
    %606 = vmatpush2.msra.mxu0 0.0
    %607 = vmatprep.subr.mxu0 0.0
    %608 = vmatpush2.msra.mxu0 0.0
    %609 = vmatprep.subr.mxu0 0.0
    %610 = vmatpush2.msra.mxu0 0.0
    %611 = vmatprep.subr.mxu0 0.0
    %612 = vmatpush2.msra.mxu0 0.0
    %613 = vmatprep.subr.mxu0 0.0
    %614 = vmatpush2.msra.mxu0 0.0
    %615 = vmatprep.subr.mxu0 0.0
    %616 = vmatpush2.msra.mxu0 0.0
    %617 = vmatprep.subr.mxu0 0.0
    %618 = vmatpush2.msra.mxu0 0.0
    %619 = vmatprep.subr.mxu0 0.0
    %620 = vmatpush2.msra.mxu0 0.0
    %621 = vmatprep.subr.mxu0 0.0
    %622 = vmatpush2.msra.mxu0 0.0
    %623 = vmatprep.subr.mxu0 0.0
    %624 = vmatpush2.msra.mxu0 0.0
    %625 = vmatprep.subr.mxu0 0.0
    %626 = vmatpush2.msra.mxu0 0.0
    %627 = vmatprep.mubr.f32.mxu0 0.0
    %628 = vmatmul.mubr.f32.gmra.mxu0 %v558
    %v629 = vpop.f32.mrf.mxu0
    %v630 = vadd.f32 %v562, %v629
    %v631 = vpop.f32.mrf.mxu0
    %632 = vdwg.mxu0
    %v633 = vtanh.pop %v630
    %s634 = scalar_lea.vmem [#allocation13], 32
    %635 = vst [vmem:[%s634] sm:$0xff] %v633
    %s636 = scalar_lea.vmem [#allocation3], 40
    %v637 = vld [vmem:[%s636] sm:$0xff]
    %638 = vmatprep.subr.mxu0 0.0
    %639 = vmatpush1.msra.mxu0 %v261
    %640 = vmatprep.subr.mxu0 0.0
    %641 = vmatpush1.msra.mxu0 %v260
    %642 = vmatprep.subr.mxu0 0.0
    %643 = vmatpush1.msra.mxu0 %v259
    %644 = vmatprep.subr.mxu0 0.0
    %645 = vmatpush1.msra.mxu0 %v258
    %646 = vmatprep.subr.mxu0 0.0
    %647 = vmatpush1.msra.mxu0 %v257
    %648 = vmatprep.subr.mxu0 0.0
    %649 = vmatpush1.msra.mxu0 %v256
    %650 = vmatprep.subr.mxu0 0.0
    %651 = vmatpush1.msra.mxu0 %v255
    %652 = vmatprep.subr.mxu0 0.0
    %653 = vmatpush1.msra.mxu0 %v254
    %654 = vmatprep.subr.mxu0 0.0
    %655 = vmatpush1.msra.mxu0 %v253
    %656 = vmatprep.subr.mxu0 0.0
    %657 = vmatpush1.msra.mxu0 %v252
    %658 = vmatprep.subr.mxu0 0.0
    %659 = vmatpush1.msra.mxu0 %v251
    %660 = vmatprep.subr.mxu0 0.0
    %661 = vmatpush1.msra.mxu0 %v250
    %662 = vmatprep.subr.mxu0 0.0
    %663 = vmatpush1.msra.mxu0 %v249
    %664 = vmatprep.subr.mxu0 0.0
    %665 = vmatpush1.msra.mxu0 %v248
    %666 = vmatprep.subr.mxu0 0.0
    %667 = vmatpush1.msra.mxu0 %v247
    %668 = vmatprep.subr.mxu0 0.0
    %669 = vmatpush1.msra.mxu0 %v246
    %670 = vmatprep.subr.mxu0 0.0
    %671 = vmatpush2.msra.mxu0 0.0
    %672 = vmatprep.subr.mxu0 0.0
    %673 = vmatpush2.msra.mxu0 0.0
    %674 = vmatprep.subr.mxu0 0.0
    %675 = vmatpush2.msra.mxu0 0.0
    %676 = vmatprep.subr.mxu0 0.0
    %677 = vmatpush2.msra.mxu0 0.0
    %678 = vmatprep.subr.mxu0 0.0
    %679 = vmatpush2.msra.mxu0 0.0
    %680 = vmatprep.subr.mxu0 0.0
    %681 = vmatpush2.msra.mxu0 0.0
    %682 = vmatprep.subr.mxu0 0.0
    %683 = vmatpush2.msra.mxu0 0.0
    %684 = vmatprep.subr.mxu0 0.0
    %685 = vmatpush2.msra.mxu0 0.0
    %686 = vmatprep.subr.mxu0 0.0
    %687 = vmatpush2.msra.mxu0 0.0
    %688 = vmatprep.subr.mxu0 0.0
    %689 = vmatpush2.msra.mxu0 0.0
    %690 = vmatprep.subr.mxu0 0.0
    %691 = vmatpush2.msra.mxu0 0.0
    %692 = vmatprep.subr.mxu0 0.0
    %693 = vmatpush2.msra.mxu0 0.0
    %694 = vmatprep.subr.mxu0 0.0
    %695 = vmatpush2.msra.mxu0 0.0
    %696 = vmatprep.subr.mxu0 0.0
    %697 = vmatpush2.msra.mxu0 0.0
    %698 = vmatprep.subr.mxu0 0.0
    %699 = vmatpush2.msra.mxu0 0.0
    %700 = vmatprep.subr.mxu0 0.0
    %701 = vmatpush2.msra.mxu0 0.0
    %702 = vmatprep.mubr.f32.mxu0 0.0
    %703 = vmatmul.mubr.f32.gmra.mxu0 %v633
    %v704 = vpop.f32.mrf.mxu0
    %v705 = vadd.f32 %v637, %v704
    %v706 = vpop.f32.mrf.mxu0
    %707 = vdwg.mxu0
    %v708 = vtanh.pop %v705
    %s709 = scalar_lea.vmem [#allocation13], 40
    %710 = vst [vmem:[%s709] sm:$0xff] %v708
    %s711 = scalar_lea.vmem [#allocation3], 48
    %v712 = vld [vmem:[%s711] sm:$0xff]
    %713 = vmatprep.subr.mxu0 0.0
    %714 = vmatpush1.msra.mxu0 %v261
    %715 = vmatprep.subr.mxu0 0.0
    %716 = vmatpush1.msra.mxu0 %v260
    %717 = vmatprep.subr.mxu0 0.0
    %718 = vmatpush1.msra.mxu0 %v259
    %719 = vmatprep.subr.mxu0 0.0
    %720 = vmatpush1.msra.mxu0 %v258
    %721 = vmatprep.subr.mxu0 0.0
    %722 = vmatpush1.msra.mxu0 %v257
    %723 = vmatprep.subr.mxu0 0.0
    %724 = vmatpush1.msra.mxu0 %v256
    %725 = vmatprep.subr.mxu0 0.0
    %726 = vmatpush1.msra.mxu0 %v255
    %727 = vmatprep.subr.mxu0 0.0
    %728 = vmatpush1.msra.mxu0 %v254
    %729 = vmatprep.subr.mxu0 0.0
    %730 = vmatpush1.msra.mxu0 %v253
    %731 = vmatprep.subr.mxu0 0.0
    %732 = vmatpush1.msra.mxu0 %v252
    %733 = vmatprep.subr.mxu0 0.0
    %734 = vmatpush1.msra.mxu0 %v251
    %735 = vmatprep.subr.mxu0 0.0
    %736 = vmatpush1.msra.mxu0 %v250
    %737 = vmatprep.subr.mxu0 0.0
    %738 = vmatpush1.msra.mxu0 %v249
    %739 = vmatprep.subr.mxu0 0.0
    %740 = vmatpush1.msra.mxu0 %v248
    %741 = vmatprep.subr.mxu0 0.0
    %742 = vmatpush1.msra.mxu0 %v247
    %743 = vmatprep.subr.mxu0 0.0
    %744 = vmatpush1.msra.mxu0 %v246
    %745 = vmatprep.subr.mxu0 0.0
    %746 = vmatpush2.msra.mxu0 0.0
    %747 = vmatprep.subr.mxu0 0.0
    %748 = vmatpush2.msra.mxu0 0.0
    %749 = vmatprep.subr.mxu0 0.0
    %750 = vmatpush2.msra.mxu0 0.0
    %751 = vmatprep.subr.mxu0 0.0
    %752 = vmatpush2.msra.mxu0 0.0
    %753 = vmatprep.subr.mxu0 0.0
    %754 = vmatpush2.msra.mxu0 0.0
    %755 = vmatprep.subr.mxu0 0.0
    %756 = vmatpush2.msra.mxu0 0.0
    %757 = vmatprep.subr.mxu0 0.0
    %758 = vmatpush2.msra.mxu0 0.0
    %759 = vmatprep.subr.mxu0 0.0
    %760 = vmatpush2.msra.mxu0 0.0
    %761 = vmatprep.subr.mxu0 0.0
    %762 = vmatpush2.msra.mxu0 0.0
    %763 = vmatprep.subr.mxu0 0.0
    %764 = vmatpush2.msra.mxu0 0.0
    %765 = vmatprep.subr.mxu0 0.0
    %766 = vmatpush2.msra.mxu0 0.0
    %767 = vmatprep.subr.mxu0 0.0
    %768 = vmatpush2.msra.mxu0 0.0
    %769 = vmatprep.subr.mxu0 0.0
    %770 = vmatpush2.msra.mxu0 0.0
    %771 = vmatprep.subr.mxu0 0.0
    %772 = vmatpush2.msra.mxu0 0.0
    %773 = vmatprep.subr.mxu0 0.0
    %774 = vmatpush2.msra.mxu0 0.0
    %775 = vmatprep.subr.mxu0 0.0
    %776 = vmatpush2.msra.mxu0 0.0
    %777 = vmatprep.mubr.f32.mxu0 0.0
    %778 = vmatmul.mubr.f32.gmra.mxu0 %v708
    %v779 = vpop.f32.mrf.mxu0
    %v780 = vadd.f32 %v712, %v779
    %v781 = vpop.f32.mrf.mxu0
    %782 = vdwg.mxu0
    %v783 = vtanh.pop %v780
    %s784 = scalar_lea.vmem [#allocation13], 48
    %785 = vst [vmem:[%s784] sm:$0xff] %v783
    %s786 = scalar_lea.vmem [#allocation3], 56
    %v787 = vld [vmem:[%s786] sm:$0xff]
    %788 = vmatprep.subr.mxu0 0.0
    %789 = vmatpush1.msra.mxu0 %v261
    %790 = vmatprep.subr.mxu0 0.0
    %791 = vmatpush1.msra.mxu0 %v260
    %792 = vmatprep.subr.mxu0 0.0
    %793 = vmatpush1.msra.mxu0 %v259
    %794 = vmatprep.subr.mxu0 0.0
    %795 = vmatpush1.msra.mxu0 %v258
    %796 = vmatprep.subr.mxu0 0.0
    %797 = vmatpush1.msra.mxu0 %v257
    %798 = vmatprep.subr.mxu0 0.0
    %799 = vmatpush1.msra.mxu0 %v256
    %800 = vmatprep.subr.mxu0 0.0
    %801 = vmatpush1.msra.mxu0 %v255
    %802 = vmatprep.subr.mxu0 0.0
    %803 = vmatpush1.msra.mxu0 %v254
    %804 = vmatprep.subr.mxu0 0.0
    %805 = vmatpush1.msra.mxu0 %v253
    %806 = vmatprep.subr.mxu0 0.0
    %807 = vmatpush1.msra.mxu0 %v252
    %808 = vmatprep.subr.mxu0 0.0
    %809 = vmatpush1.msra.mxu0 %v251
    %810 = vmatprep.subr.mxu0 0.0
    %811 = vmatpush1.msra.mxu0 %v250
    %812 = vmatprep.subr.mxu0 0.0
    %813 = vmatpush1.msra.mxu0 %v249
    %814 = vmatprep.subr.mxu0 0.0
    %815 = vmatpush1.msra.mxu0 %v248
    %816 = vmatprep.subr.mxu0 0.0
    %817 = vmatpush1.msra.mxu0 %v247
    %818 = vmatprep.subr.mxu0 0.0
    %819 = vmatpush1.msra.mxu0 %v246
    %820 = vmatprep.subr.mxu0 0.0
    %821 = vmatpush2.msra.mxu0 0.0
    %822 = vmatprep.subr.mxu0 0.0
    %823 = vmatpush2.msra.mxu0 0.0
    %824 = vmatprep.subr.mxu0 0.0
    %825 = vmatpush2.msra.mxu0 0.0
    %826 = vmatprep.subr.mxu0 0.0
    %827 = vmatpush2.msra.mxu0 0.0
    %828 = vmatprep.subr.mxu0 0.0
    %829 = vmatpush2.msra.mxu0 0.0
    %830 = vmatprep.subr.mxu0 0.0
    %831 = vmatpush2.msra.mxu0 0.0
    %832 = vmatprep.subr.mxu0 0.0
    %833 = vmatpush2.msra.mxu0 0.0
    %834 = vmatprep.subr.mxu0 0.0
    %835 = vmatpush2.msra.mxu0 0.0
    %836 = vmatprep.subr.mxu0 0.0
    %837 = vmatpush2.msra.mxu0 0.0
    %838 = vmatprep.subr.mxu0 0.0
    %839 = vmatpush2.msra.mxu0 0.0
    %840 = vmatprep.subr.mxu0 0.0
    %841 = vmatpush2.msra.mxu0 0.0
    %842 = vmatprep.subr.mxu0 0.0
    %843 = vmatpush2.msra.mxu0 0.0
    %844 = vmatprep.subr.mxu0 0.0
    %845 = vmatpush2.msra.mxu0 0.0
    %846 = vmatprep.subr.mxu0 0.0
    %847 = vmatpush2.msra.mxu0 0.0
    %848 = vmatprep.subr.mxu0 0.0
    %849 = vmatpush2.msra.mxu0 0.0
    %850 = vmatprep.subr.mxu0 0.0
    %851 = vmatpush2.msra.mxu0 0.0
    %852 = vmatprep.mubr.f32.mxu0 0.0
    %853 = vmatmul.mubr.f32.gmra.mxu0 %v783
    %v854 = vpop.f32.mrf.mxu0
    %v855 = vadd.f32 %v787, %v854
    %v856 = vpop.f32.mrf.mxu0
    %857 = vdwg.mxu0
    %v858 = vtanh.pop %v855
    %s859 = scalar_lea.vmem [#allocation13], 56
    %860 = vst [vmem:[%s859] sm:$0xff] %v858
    %861 = vst [vmem:[#allocation2] sm:$0xff] %v858
    // Predicated region
    $region54: #{tpu_custom_call.1} parent=1 // pred_check
      %p862 = pneg %p96
    $region55: #{tpu_custom_call.1} parent=1 // pred_check_branch
      %864 = sbr.rel (%p862) target = $region57
    $region56: #{tpu_custom_call.1} parent=1 // pred_region
      %v865 = vld [vmem:[#allocation12] sm:$0xff]
      %v866 = vld [vmem:[#allocation12 + $0x8] sm:$0xff]
      %v867 = vld [vmem:[#allocation12 + $0x10] sm:$0xff]
      %v868 = vld [vmem:[#allocation12 + $0x18] sm:$0xff]
      %v869 = vld [vmem:[#allocation12 + $0x20] sm:$0xff]
      %v870 = vld [vmem:[#allocation12 + $0x28] sm:$0xff]
      %v871 = vld [vmem:[#allocation12 + $0x30] sm:$0xff]
      %v872 = vld [vmem:[#allocation12 + $0x38] sm:$0xff]
      %v873 = vld [vmem:[#allocation12 + $0x40] sm:$0xff]
      %v874 = vld [vmem:[#allocation12 + $0x48] sm:$0xff]
      %v875 = vld [vmem:[#allocation12 + $0x50] sm:$0xff]
      %v876 = vld [vmem:[#allocation12 + $0x58] sm:$0xff]
      %v877 = vld [vmem:[#allocation12 + $0x60] sm:$0xff]
      %v878 = vld [vmem:[#allocation12 + $0x68] sm:$0xff]
      %v879 = vld [vmem:[#allocation12 + $0x70] sm:$0xff]
      %v880 = vld [vmem:[#allocation12 + $0x78] sm:$0xff]
      %v881 = vld [vmem:[%s6] sm:$0x1]
      %v883 = vlaneseq
      %v884 = vshrl.u32 %v883, 7
      %v885 = vsub.s32 0, %v884
      %v886 = vrot.slane %v881, %v885
      %888 = vmatprep.subr.mxu0 0.0
      %889 = vmatpush1.msra.mxu0 %v880
      %890 = vmatprep.subr.mxu0 0.0
      %891 = vmatpush1.msra.mxu0 %v879
      %892 = vmatprep.subr.mxu0 0.0
      %893 = vmatpush1.msra.mxu0 %v878
      %894 = vmatprep.subr.mxu0 0.0
      %895 = vmatpush1.msra.mxu0 %v877
      %896 = vmatprep.subr.mxu0 0.0
      %897 = vmatpush1.msra.mxu0 %v876
      %898 = vmatprep.subr.mxu0 0.0
      %899 = vmatpush1.msra.mxu0 %v875
      %900 = vmatprep.subr.mxu0 0.0
      %901 = vmatpush1.msra.mxu0 %v874
      %902 = vmatprep.subr.mxu0 0.0
      %903 = vmatpush1.msra.mxu0 %v873
      %904 = vmatprep.subr.mxu0 0.0
      %905 = vmatpush1.msra.mxu0 %v872
      %906 = vmatprep.subr.mxu0 0.0
      %907 = vmatpush1.msra.mxu0 %v871
      %908 = vmatprep.subr.mxu0 0.0
      %909 = vmatpush1.msra.mxu0 %v870
      %910 = vmatprep.subr.mxu0 0.0
      %911 = vmatpush1.msra.mxu0 %v869
      %912 = vmatprep.subr.mxu0 0.0
      %913 = vmatpush1.msra.mxu0 %v868
      %914 = vmatprep.subr.mxu0 0.0
      %915 = vmatpush1.msra.mxu0 %v867
      %916 = vmatprep.subr.mxu0 0.0
      %917 = vmatpush1.msra.mxu0 %v866
      %918 = vmatprep.subr.mxu0 0.0
      %919 = vmatpush1.msra.mxu0 %v865
      %920 = vmatprep.subr.mxu0 0.0
      %921 = vmatpush2.msra.mxu0 0.0
      %922 = vmatprep.subr.mxu0 0.0
      %923 = vmatpush2.msra.mxu0 0.0
      %924 = vmatprep.subr.mxu0 0.0
      %925 = vmatpush2.msra.mxu0 0.0
      %926 = vmatprep.subr.mxu0 0.0
      %927 = vmatpush2.msra.mxu0 0.0
      %928 = vmatprep.subr.mxu0 0.0
      %929 = vmatpush2.msra.mxu0 0.0
      %930 = vmatprep.subr.mxu0 0.0
      %931 = vmatpush2.msra.mxu0 0.0
      %932 = vmatprep.subr.mxu0 0.0
      %933 = vmatpush2.msra.mxu0 0.0
      %934 = vmatprep.subr.mxu0 0.0
      %935 = vmatpush2.msra.mxu0 0.0
      %936 = vmatprep.subr.mxu0 0.0
      %937 = vmatpush2.msra.mxu0 0.0
      %938 = vmatprep.subr.mxu0 0.0
      %939 = vmatpush2.msra.mxu0 0.0
      %940 = vmatprep.subr.mxu0 0.0
      %941 = vmatpush2.msra.mxu0 0.0
      %942 = vmatprep.subr.mxu0 0.0
      %943 = vmatpush2.msra.mxu0 0.0
      %944 = vmatprep.subr.mxu0 0.0
      %945 = vmatpush2.msra.mxu0 0.0
      %946 = vmatprep.subr.mxu0 0.0
      %947 = vmatpush2.msra.mxu0 0.0
      %948 = vmatprep.subr.mxu0 0.0
      %949 = vmatpush2.msra.mxu0 0.0
      %950 = vmatprep.subr.mxu0 0.0
      %951 = vmatpush2.msra.mxu0 0.0
      %952 = vmatprep.mubr.f32.mxu0 0.0
      %953 = vmatmul.mubr.f32.gmra.mxu0 %v858
      %v954 = vpop.f32.mrf.mxu0
      %v955 = vadd.f32 %v886, %v954
      %v956 = vpop.f32.mrf.mxu0
      %957 = vdwg.mxu0
      %958 = vst [vmem:[#allocation14] sm:$0xff] %v955
    $region57: #{tpu_custom_call.1} parent=1 // pred_fallthru
      _
    // Predicated region
    $region58: #{tpu_custom_call.1} parent=1 // pred_check
      _
    $region59: #{tpu_custom_call.1} parent=1 // pred_check_branch
      %960 = sbr.rel (0) target = $region61
    $region60: #{tpu_custom_call.1} parent=1 // pred_region
      %s962 = ssub.s32 1024, 1024
      %963 = vsyncadd [#allocation6], %s962
      %s964 = sshll.u32 [#allocation13], 4
      %s965 = int_to_ptr.vmem [resolvable:$true] %s964
      %970 = dma.vmem_to_hbm [thread:$0]  %s965, 1024, %s7, [#allocation6], 128, 128, 8
    $region61: #{tpu_custom_call.1} parent=1 // pred_fallthru
      _
    // Predicated region
    $region62: #{tpu_custom_call.1} parent=1 // pred_check
      _
    $region63: #{tpu_custom_call.1} parent=1 // pred_check_branch
      %972 = sbr.rel (0) target = $region65
    $region64: #{tpu_custom_call.1} parent=1 // pred_region
      %s974 = ssub.s32 128, 128
      %975 = vsyncadd [#allocation15], %s974
      %s977 = sshll.u32 [#allocation14], 4
      %s978 = int_to_ptr.vmem [resolvable:$true] %s977
      %980 = dma.vmem_to_hbm [thread:$0]  %s978, 128, %s8, [#allocation15]
    $region65: #{tpu_custom_call.1} parent=1 // pred_fallthru
      _
    // Predicated region
    $region66: #{tpu_custom_call.1} parent=1 // pred_check
      _
    $region67: #{tpu_custom_call.1} parent=1 // pred_check_branch
      %982 = sbr.rel (0) target = $region69
    $region68: #{tpu_custom_call.1} parent=1 // pred_region
      %983 = dma.done [#allocation6], 1024
    $region69: #{tpu_custom_call.1} parent=1 // pred_fallthru
      _
    // Predicated region
    $region70: #{tpu_custom_call.1} parent=1 // pred_check
      _
    $region71: #{tpu_custom_call.1} parent=1 // pred_check_branch
      %985 = sbr.rel (0) target = $region73
    $region72: #{tpu_custom_call.1} parent=1 // pred_region
      %986 = dma.done [#allocation15], 128
    $region73: #{tpu_custom_call.1} parent=1 // pred_fallthru
      _
    %987 = vsyncpa [#allocation5], 1
    %988 = vsyncpa [#allocation8], 1
    %989 = vsyncpa [#allocation11], 1
    %990 = vsyncpa [#allocation6], 1
    %991 = vsyncpa [#allocation15], 1

</llo_original>
